<compile_context>
chip_gen: v7x
topology: tpu7x:2x2x1
jax: 0.10.0
libtpu: 0.0.40
codegen_flags: <defaults>
</compile_context>

<pallas_src>
import functools

import jax
import jax.numpy as jnp
from jax.experimental import pallas as pl
from jax.experimental.pallas import tpu as pltpu


def _round_up(x, m):
    return ((x + m - 1) // m) * m


def _cdiv(a, b):
    return -(-a // b)


# ----------------------------------------------------------------------------
# Style MLP (plain XLA -- the matmuls are microscopic; a dedicated Pallas call
# is pure launch / weight-DMA overhead, per perf review).
# ----------------------------------------------------------------------------
def style_mlp(w, params):
    W1, b1, W2, b2, W3, b3 = params
    h = jnp.maximum(w @ W1 + b1, 0.0)
    h = jnp.maximum(h @ W2 + b2, 0.0)
    return h @ W3 + b3


def init_mlp_params(key, in_dim, hidden_dim, out_dim):
    dims = [(in_dim, hidden_dim), (hidden_dim, hidden_dim), (hidden_dim, out_dim)]
    params = []
    for (fi, fo) in dims:
        key, kw, kb = jax.random.split(key, 3)
        bound = 1.0 / jnp.sqrt(jnp.float32(fi))
        Wm = jax.random.uniform(kw, (fi, fo), jnp.float32, -bound, bound)
        bm = jax.random.uniform(kb, (1, fo), jnp.float32, -bound, bound)
        params += [Wm, bm]
    return tuple(params)


# ----------------------------------------------------------------------------
# VMEM / tile planning (generation aware)
# ----------------------------------------------------------------------------
def _vmem_capacity_bytes():
    try:
        return int(pltpu.get_tpu_info().vmem_capacity_bytes)
    except Exception:
        return 64 * 1024 * 1024  # conservative: v7x per-core VMEM


def _plan_single_pass(nc, hw, itemsize, cap, tile_rows=None):
    """Pick (tile_rows, vmem_limit) for the fused single-pass kernel, or None
    if even an 8-row block does not fit (caller falls back to two-pass)."""
    hw_phys = _round_up(hw, 128)                     # physical lane footprint
    # resident style blocks: 2 arrays x (up to) 2 buffers, 128-lane padded f32
    style_fixed = 2 * 2 * _round_up(nc, 8) * 128 * 4
    # in + out tiles double-buffered (4*itemsize/elem) + ~2 f32 compute temps
    per_row = hw_phys * (4 * itemsize + 8)
    headroom = 2 << 20

    limit = min(int(cap * 0.75), 96 * 1024 * 1024)   # 48 MiB v7x / 96 MiB v5e,v6e
    budget = limit - style_fixed - headroom
    max_rows = budget // per_row if budget > 0 else 0
    if max_rows < 8:
        limit = min(int(cap * 0.85), 112 * 1024 * 1024)
        budget = limit - style_fixed - headroom
        max_rows = budget // per_row if budget > 0 else 0
        if max_rows < 8:
            return None

    if tile_rows is None:
        tr = min((max_rows // 8) * 8, _round_up(nc, 8))
        if nc > 8:
            # >= 2 grid steps so v7x megacore splits the row axis
            tr = min(tr, _round_up(_cdiv(nc, 2), 8))
        tr = max(tr, 8)
    else:
        tr = max(8, (min(tile_rows, max_rows) // 8) * 8)
        tr = min(tr, _round_up(nc, 8))
    return tr, limit


def _plan_two_pass(nc, hw, itemsize, cap, tile_rows=None, tile_hw=None):
    limit = min(int(cap * 0.75), 96 * 1024 * 1024)
    if tile_rows is None:
        tile_rows = 8
    else:
        tile_rows = max(8, (tile_rows // 8) * 8)
    if tile_hw is None:
        per_col = tile_rows * (4 * itemsize + 8)
        budget = limit - (4 << 20)
        tile_hw = ((budget // per_col) // 128) * 128
        tile_hw = max(128, min(tile_hw, _round_up(hw, 128)))
    else:
        tile_hw = max(128, _round_up(tile_hw, 128))
    return tile_rows, tile_hw, limit


# ----------------------------------------------------------------------------
# Single-pass fused AdaIN kernel (common case)
# ----------------------------------------------------------------------------
def adain_kernel(x_ref, scale_ref, shift_ref, o_ref, *, tile_rows, inv_hw, eps):
    # scale/shift are resident whole-array blocks; slice the rows for this step.
    r0 = pl.multiple_of(pl.program_id(0) * tile_rows, 8)
    scale = scale_ref[pl.ds(r0, tile_rows), :]            # (tile_rows, 1) f32
    shift = shift_ref[pl.ds(r0, tile_rows), :]

    x = x_ref[...].astype(jnp.float32)                    # (tile_rows, hw)
    inv_n = jnp.float32(inv_hw)
    mean = jnp.sum(x, axis=-1, keepdims=True) * inv_n
    xc = x - mean                                         # centered (stable var)
    var = jnp.sum(xc * xc, axis=-1, keepdims=True) * inv_n
    a = scale * jax.lax.rsqrt(var + jnp.float32(eps))
    o_ref[...] = (a * xc + shift).astype(o_ref.dtype)


def _adain_single_pass(x2, s2, t2, nc, hw, tile_rows, vmem_limit, eps, out_dtype):
    grid_rows = _cdiv(nc, tile_rows)
    nc_pad = grid_rows * tile_rows
    if nc_pad != nc:
        # Padding the tiny (nc, 1) style arrays is negligible HBM traffic and
        # keeps the in-kernel pl.ds slice always in bounds.
        s2 = jnp.pad(s2, ((0, nc_pad - nc), (0, 0)))
        t2 = jnp.pad(t2, ((0, nc_pad - nc), (0, 0)))

    kernel = functools.partial(adain_kernel, tile_rows=tile_rows,
                               inv_hw=1.0 / hw, eps=eps)
    return pl.pallas_call(
        kernel,
        out_shape=jax.ShapeDtypeStruct((nc, hw), out_dtype),
        grid=(grid_rows,),
        in_specs=[
            pl.BlockSpec((tile_rows, hw), lambda i: (i, 0)),   # x row tile
            pl.BlockSpec((nc_pad, 1), lambda i: (0, 0)),       # resident scale
            pl.BlockSpec((nc_pad, 1), lambda i: (0, 0)),       # resident shift
        ],
        out_specs=pl.BlockSpec((tile_rows, hw), lambda i: (i, 0)),
        compiler_params=pltpu.CompilerParams(
            dimension_semantics=("parallel",),
            vmem_limit_bytes=int(vmem_limit)),
    )(x2, s2, t2)


# ----------------------------------------------------------------------------
# Two-pass fallback for feature maps too large for a single row-tile block.
# Pass 1: per-row sum / sum-of-squares reduction over H*W tiles.
# Pass 2: fused affine apply  out = a*x + b.
# ----------------------------------------------------------------------------
def stats_kernel(x_ref, sum_ref, sumsq_ref, *, hw, tile_hw):
    j = pl.program_id(1)

    @pl.when(j == 0)
    def _():
        sum_ref[...] = jnp.zeros_like(sum_ref)
        sumsq_ref[...] = jnp.zeros_like(sumsq_ref)

    x = x_ref[...].astype(jnp.float32)
    # Mask stale lanes in the last (partial) H*W block.
    lane = jax.lax.broadcasted_iota(jnp.int32, x.shape, 1) + j * tile_hw
    x = jnp.where(lane < hw, x, 0.0)
    sum_ref[...] += jnp.sum(x, axis=-1, keepdims=True)
    sumsq_ref[...] += jnp.sum(x * x, axis=-1, keepdims=True)


def affine_kernel(x_ref, a_ref, b_ref, o_ref):
    o_ref[...] = (a_ref[...] * x_ref[...].astype(jnp.float32)
                  + b_ref[...]).astype(o_ref.dtype)


def _adain_two_pass(x2, s2, t2, nc, hw, tile_rows, tile_hw, vmem_limit, eps,
                    out_dtype):
    nc_tiles = _cdiv(nc, tile_rows)
    hw_tiles = _cdiv(hw, tile_hw)

    sums, sqs = pl.pallas_call(
        functools.partial(stats_kernel, hw=hw, tile_hw=tile_hw),
        out_shape=(jax.ShapeDtypeStruct((nc, 1), jnp.float32),
                   jax.ShapeDtypeStruct((nc, 1), jnp.float32)),
        grid=(nc_tiles, hw_tiles),
        in_specs=[pl.BlockSpec((tile_rows, tile_hw), lambda i, j: (i, j))],
        out_specs=(pl.BlockSpec((tile_rows, 1), lambda i, j: (i, 0)),
                   pl.BlockSpec((tile_rows, 1), lambda i, j: (i, 0))),
        compiler_params=pltpu.CompilerParams(
            dimension_semantics=("parallel", "arbitrary"),
            vmem_limit_bytes=int(vmem_limit)),
    )(x2)

    # Tiny (nc, 1) arithmetic in XLA.
    mean = sums / hw
    var = jnp.maximum(sqs / hw - mean * mean, 0.0)
    a = (s2 * jax.lax.rsqrt(var + jnp.float32(eps))).astype(jnp.float32)
    b = (t2 - a * mean).astype(jnp.float32)

    return pl.pallas_call(
        affine_kernel,
        out_shape=jax.ShapeDtypeStruct((nc, hw), out_dtype),
        grid=(nc_tiles, hw_tiles),
        in_specs=[pl.BlockSpec((tile_rows, tile_hw), lambda i, j: (i, j)),
                  pl.BlockSpec((tile_rows, 1), lambda i, j: (i, 0)),
                  pl.BlockSpec((tile_rows, 1), lambda i, j: (i, 0))],
        out_specs=pl.BlockSpec((tile_rows, tile_hw), lambda i, j: (i, j)),
        compiler_params=pltpu.CompilerParams(
            dimension_semantics=("parallel", "parallel"),
            vmem_limit_bytes=int(vmem_limit)),
    )(x2, a, b)


# ----------------------------------------------------------------------------
# Public wrappers
# ----------------------------------------------------------------------------
def adain_pallas(x, style_scale, style_shift, *, eps=1e-5, two_pass=None,
                 tile_rows=None, tile_hw=None):
    """x: (N, C, H, W); style_scale / style_shift: (N, C). Returns (N, C, H, W)."""
    N, C, H, W = x.shape
    nc, hw = N * C, H * W
    itemsize = jnp.dtype(x.dtype).itemsize
    cap = _vmem_capacity_bytes()

    x2 = x.reshape(nc, hw)                       # free view: NCHW rows contiguous
    s2 = style_scale.reshape(nc, 1).astype(jnp.float32)
    t2 = style_shift.reshape(nc, 1).astype(jnp.float32)

    use_two_pass = bool(two_pass) if two_pass is not None else False
    plan = None
    if not use_two_pass:
        plan = _plan_single_pass(nc, hw, itemsize, cap, tile_rows)
        if plan is None:
            use_two_pass = True                  # graceful large-H*W fallback

    if use_two_pass:
        tr, thw, limit = _plan_two_pass(nc, hw, itemsize, cap, tile_rows, tile_hw)
        out = _adain_two_pass(x2, s2, t2, nc, hw, tr, thw, limit, eps, x.dtype)
    else:
        tr, limit = plan
        out = _adain_single_pass(x2, s2, t2, nc, hw, tr, limit, eps, x.dtype)
    return out.reshape(N, C, H, W)


def adaptive_instance_norm_2d(x, w, scale_params, shift_params, eps=1e-5):
    """Full forward: AdaIN(x, w)."""
    style_scale = style_mlp(w, scale_params)     # (N, C)
    style_shift = style_mlp(w, shift_params)     # (N, C)
    return adain_pallas(x, style_scale, style_shift, eps=eps)


# ----------------------------------------------------------------------------
# Pure-JAX reference
# ----------------------------------------------------------------------------
def _adain_ref(x, wvec, scale_params, shift_params, eps=1e-5):
    mean = jnp.mean(x, axis=(2, 3), keepdims=True)
    var = jnp.mean((x - mean) ** 2, axis=(2, 3), keepdims=True)
    xn = (x - mean) * jax.lax.rsqrt(var + eps)
    ss = style_mlp(wvec, scale_params)[:, :, None, None]
    sh = style_mlp(wvec, shift_params)[:, :, None, None]
    return ss * xn + sh


if __name__ == "__main__":
    # Case 1: small canonical shape, auto tiling (single-pass path).
    N, C, H, W = 2, 4, 16, 16
    w_dim, h_dim = 8, 32

    key = jax.random.PRNGKey(0)
    kx, kw, kp1, kp2 = jax.random.split(key, 4)
    x = jax.random.normal(kx, (N, C, H, W), jnp.float32)
    wvec = jax.random.normal(kw, (N, w_dim), jnp.float32)
    scale_params = init_mlp_params(kp1, w_dim, h_dim, C)
    shift_params = init_mlp_params(kp2, w_dim, h_dim, C)

    out = jax.block_until_ready(
        adaptive_instance_norm_2d(x, wvec, scale_params, shift_params))
    ref = _adain_ref(x, wvec, scale_params, shift_params)
    assert jnp.allclose(out, ref, atol=1e-4, rtol=1e-4), "mismatch (case 1)"

    # Case 2: multi-step grid, partial last row block, ragged (non-128) lane dim
    # (N*C = 100 rows, H*W = 63 lanes), no wrapper-side padding/slicing of x.
    N2, C2, H2, W2 = 2, 50, 7, 9
    kx2, kw2 = jax.random.split(jax.random.PRNGKey(1))
    x_b = jax.random.normal(kx2, (N2, C2, H2, W2), jnp.float32)
    w_b = jax.random.normal(kw2, (N2, w_dim), jnp.float32)
    sp_b = init_mlp_params(kp1, w_dim, h_dim, C2)
    tp_b = init_mlp_params(kp2, w_dim, h_dim, C2)
    ss_b, sh_b = style_mlp(w_b, sp_b), style_mlp(w_b, tp_b)
    out_b = jax.block_until_ready(adain_pallas(x_b, ss_b, sh_b, tile_rows=24))
    ref_b = _adain_ref(x_b, w_b, sp_b, tp_b)
    assert jnp.allclose(out_b, ref_b, atol=1e-4, rtol=1e-4), "mismatch (case 2)"

    # Case 3: force the two-pass large-H*W fallback path on a small shape
    # (exercises the H*W-tiled reduction with lane masking + affine apply).
    N3, C3, H3, W3 = 2, 8, 20, 20
    kx3, kw3 = jax.random.split(jax.random.PRNGKey(2))
    x_c = jax.random.normal(kx3, (N3, C3, H3, W3), jnp.float32)
    w_c = jax.random.normal(kw3, (N3, w_dim), jnp.float32)
    sp_c = init_mlp_params(kp1, w_dim, h_dim, C3)
    tp_c = init_mlp_params(kp2, w_dim, h_dim, C3)
    ss_c, sh_c = style_mlp(w_c, sp_c), style_mlp(w_c, tp_c)
    out_c = jax.block_until_ready(
        adain_pallas(x_c, ss_c, sh_c, two_pass=True, tile_rows=8, tile_hw=256))
    ref_c = _adain_ref(x_c, w_c, sp_c, tp_c)
    assert jnp.allclose(out_c, ref_c, atol=1e-4, rtol=1e-4), "mismatch (case 3)"

    print("KERNEL_OK")
</pallas_src>

<mosaic_0001>
module attributes {stable_mosaic.version = 11 : i64} {
  func.func @adain_kernel(%arg0: i32, %arg1: memref<8x256xf32, #tpu.memory_space<vmem>>, %arg2: memref<8x1xf32, #tpu.memory_space<vmem>>, %arg3: memref<8x1xf32, #tpu.memory_space<vmem>>, %arg4: memref<8x256xf32, #tpu.memory_space<vmem>>) attributes {dimension_semantics = [#tpu.dimension_semantics<parallel>], iteration_bounds = array<i64: 1>, scalar_prefetch = 0 : i64, scratch_operands = 0 : i64, tpu.core_type = #tpu.core_type<tc>, window_params = [{transform_indices = @transform_0, window_bounds = array<i64: 8, 256>}, {pipeline_mode = #tpu.pipeline_mode<synchronous>, transform_indices = @transform_1, window_bounds = array<i64: 8, 1>}, {pipeline_mode = #tpu.pipeline_mode<synchronous>, transform_indices = @transform_2, window_bounds = array<i64: 8, 1>}, {transform_indices = @transform_3, window_bounds = array<i64: 8, 256>}]} {
    %c8_i32 = arith.constant 8 : i32
    %0 = arith.muli %arg0, %c8_i32 : i32
    %1 = tpu.assume_multiple %0, 8 : i32
    %2 = arith.index_cast %1 : i32 to index
    %c0 = arith.constant 0 : index
    %3 = vector.load %arg2[%2, %c0] : memref<8x1xf32, #tpu.memory_space<vmem>>, vector<8x1xf32>
    %4 = arith.index_cast %1 : i32 to index
    %c0_0 = arith.constant 0 : index
    %5 = vector.load %arg3[%4, %c0_0] : memref<8x1xf32, #tpu.memory_space<vmem>>, vector<8x1xf32>
    %c0_1 = arith.constant 0 : index
    %c0_2 = arith.constant 0 : index
    %6 = vector.load %arg1[%c0_1, %c0_2] : memref<8x256xf32, #tpu.memory_space<vmem>>, vector<8x256xf32>
    %cst = arith.constant dense<0.000000e+00> : vector<8xf32>
    %7 = vector.multi_reduction <add>, %6, %cst [1] : vector<8x256xf32> to vector<8xf32>
    %8 = vector.shape_cast %7 : vector<8xf32> to vector<8x1xf32>
    %cst_3 = arith.constant 3.906250e-03 : f32
    %9 = vector.broadcast %cst_3 : f32 to vector<8x1xf32>
    %10 = arith.mulf %8, %9 : vector<8x1xf32>
    %11 = vector.broadcast %10 : vector<8x1xf32> to vector<8x256xf32>
    %12 = arith.subf %6, %11 : vector<8x256xf32>
    %13 = arith.mulf %12, %12 : vector<8x256xf32>
    %cst_4 = arith.constant dense<0.000000e+00> : vector<8xf32>
    %14 = vector.multi_reduction <add>, %13, %cst_4 [1] : vector<8x256xf32> to vector<8xf32>
    %15 = vector.shape_cast %14 : vector<8xf32> to vector<8x1xf32>
    %cst_5 = arith.constant 3.906250e-03 : f32
    %16 = vector.broadcast %cst_5 : f32 to vector<8x1xf32>
    %17 = arith.mulf %15, %16 : vector<8x1xf32>
    %cst_6 = arith.constant 9.99999974E-6 : f32
    %18 = vector.broadcast %cst_6 : f32 to vector<8x1xf32>
    %19 = arith.addf %17, %18 : vector<8x1xf32>
    %20 = math.rsqrt %19 : vector<8x1xf32>
    %21 = arith.mulf %3, %20 : vector<8x1xf32>
    %22 = vector.broadcast %21 : vector<8x1xf32> to vector<8x256xf32>
    %23 = arith.mulf %22, %12 : vector<8x256xf32>
    %24 = vector.broadcast %5 : vector<8x1xf32> to vector<8x256xf32>
    %25 = arith.addf %23, %24 : vector<8x256xf32>
    %c0_7 = arith.constant 0 : index
    %c0_8 = arith.constant 0 : index
    %26 = vector.load %arg4[%c0_7, %c0_8] : memref<8x256xf32, #tpu.memory_space<vmem>>, vector<8x256xf32>
    tpu.vector_store %arg4[%c0_7, %c0_8], %25 {strides = array<i32>} : memref<8x256xf32, #tpu.memory_space<vmem>>, vector<8x256xf32>,
    return
  }
  func.func @transform_0(%arg0: i32) -> (i32, i32) {
    %c0_i32 = arith.constant 0 : i32
    %c0_i32_0 = arith.constant 0 : i32
    return %arg0, %c0_i32 : i32, i32
  }
  func.func @transform_1(%arg0: i32) -> (i32, i32) {
    %c0_i32 = arith.constant 0 : i32
    %c0_i32_0 = arith.constant 0 : i32
    %c0_i32_1 = arith.constant 0 : i32
    return %c0_i32, %c0_i32_0 : i32, i32
  }
  func.func @transform_2(%arg0: i32) -> (i32, i32) {
    %c0_i32 = arith.constant 0 : i32
    %c0_i32_0 = arith.constant 0 : i32
    %c0_i32_1 = arith.constant 0 : i32
    return %c0_i32, %c0_i32_0 : i32, i32
  }
  func.func @transform_3(%arg0: i32) -> (i32, i32) {
    %c0_i32 = arith.constant 0 : i32
    %c0_i32_0 = arith.constant 0 : i32
    return %arg0, %c0_i32 : i32, i32
  }
}

</mosaic_0001>

<llo_original>
// kernel: tpu_custom_call.1
$region0: #{tpu_custom_call.1}
  #allocation0 [shape = 'u32[]', space=smem, size = 0x4, offset = 0x4, fixed_abs, tag = 'smem constant byte address 0x4 - core index']
  #allocation1 [shape = 'u32[144,128]{1,0:T(1,128)}', space=vmem, size = 0x12000, scoped, tag = 'internal scratch']
  %s0 = inlined_call_operand.vmem [shape: f32[8,256], index: 0, kind: input, shape index: {}]
  %s1 = inlined_call_operand.vmem [shape: f32[8,1], index: 1, kind: input, shape index: {}]
  %s2 = inlined_call_operand.vmem [shape: f32[8,1], index: 2, kind: input, shape index: {}]
  %s3 = inlined_call_operand.hbm [shape: f32[8,256], index: 3, kind: output, shape index: {}]
  %s4 = sld [smem:[#allocation0]]
  $region22: #{tpu_custom_call.1} parent=0
    _
  %s6 = ssub.s32 1, %s4
  %s7 = scalar_select 0, %s6, %s4
  $region1: #{tpu_custom_call.1} parent=0
    #allocation2 [shape = 'u8[8192]{0}', space=vmem, size = 0x2000, scoped, tag = 'output window, operand 0, single buffered']
    #allocation3 [shape = 's32[1]{0}', space=sflag, size = 0x4, scoped, tag = 'scoped memory for tpu_custom_call.1']
    %8 = vsyncpa [#allocation3], 0
    // Predicated region
    $region2: #{tpu_custom_call.1} parent=1 // pred_check
      _
    $region3: #{tpu_custom_call.1} parent=1 // pred_check_branch
      %10 = sbr.rel (0) target = $region5
    $region4: #{tpu_custom_call.1} parent=1 // pred_region
      _
    $region5: #{tpu_custom_call.1} parent=1 // pred_fallthru
      _
    // Predicated region
    $region6: #{tpu_custom_call.1} parent=1 // pred_check
      _
    $region7: #{tpu_custom_call.1} parent=1 // pred_check_branch
      %12 = sbr.rel (0) target = $region9
    $region8: #{tpu_custom_call.1} parent=1 // pred_region
      _
    $region9: #{tpu_custom_call.1} parent=1 // pred_fallthru
      _
    // Predicated region
    $region10: #{tpu_custom_call.1} parent=1 // pred_check
      _
    $region11: #{tpu_custom_call.1} parent=1 // pred_check_branch
      %14 = sbr.rel (0) target = $region13
    $region12: #{tpu_custom_call.1} parent=1 // pred_region
      _
    $region13: #{tpu_custom_call.1} parent=1 // pred_fallthru
      _
    %s15 = smul.u32 0, 8
    %s16 = scalar_lea.vmem %s1, %s15
    %v17 = vld [vmem:[%s16] sm:$0xff]
    %s18 = scalar_lea.vmem %s2, %s15
    %v19 = vld [vmem:[%s18] sm:$0xff]
    %v20 = vld [vmem:[%s0] sm:$0xff]
    %v21 = vld [vmem:[%s0 + $0x8] sm:$0xff]
    %v22 = vadd.f32 %v20, %v21
    %23 = vadd.xlane.f32.xlu0 %v22
    %v24 = vpop.xlane.xlu0 %23
    %v25 = vmul.f32 %v24, 0.00390625
    %v26 = vsub.f32 %v20, %v25
    %v27 = vsub.f32 %v21, %v25
    %v28 = vmul.f32 %v26, %v26
    %v29 = vmul.f32 %v27, %v27
    %v30 = vadd.f32 %v28, %v29
    %31 = vadd.xlane.f32.xlu0 %v30
    %v32 = vpop.xlane.xlu0 %31
    %v33 = vmul.f32 %v32, 0.00390625
    %v34 = vadd.f32 %v33, 1e-05
    %v35 = vrsqrt.pop %v34
    %v36 = vmul.f32 %v17, %v35
    %38 = vset.pattern.permute.xlu0 0
    %39 = vperm.xlu0 %38, %v36
    %v40 = vpop.permute.xlu0 %39
    %v42 = vmul.f32 %v40, %v26
    %v43 = vmul.f32 %v40, %v27
    %45 = vset.pattern.permute.xlu0 0
    %46 = vperm.xlu0 %45, %v19
    %v47 = vpop.permute.xlu0 %46
    %v49 = vadd.f32 %v42, %v47
    %v50 = vadd.f32 %v43, %v47
    %51 = vst [vmem:[#allocation2] sm:$0xff] %v49
    %52 = vst [vmem:[#allocation2 + $0x8] sm:$0xff] %v50
    // Predicated region
    $region14: #{tpu_custom_call.1} parent=1 // pred_check
      _
    $region15: #{tpu_custom_call.1} parent=1 // pred_check_branch
      %54 = sbr.rel (0) target = $region17
    $region16: #{tpu_custom_call.1} parent=1 // pred_region
      %s56 = ssub.s32 256, 256
      %57 = vsyncadd [#allocation3], %s56
      %s59 = sshll.u32 [#allocation2], 4
      %s60 = int_to_ptr.vmem [resolvable:$true] %s59
      %62 = dma.vmem_to_hbm [thread:$0]  %s60, 256, %s3, [#allocation3]
    $region17: #{tpu_custom_call.1} parent=1 // pred_fallthru
      _
    // Predicated region
    $region18: #{tpu_custom_call.1} parent=1 // pred_check
      _
    $region19: #{tpu_custom_call.1} parent=1 // pred_check_branch
      %64 = sbr.rel (0) target = $region21
    $region20: #{tpu_custom_call.1} parent=1 // pred_region
      %65 = dma.done [#allocation3], 256
    $region21: #{tpu_custom_call.1} parent=1 // pred_fallthru
      _
    %66 = vsyncpa [#allocation3], 1

</llo_original>
